<compile_context>
chip_gen: v7x
topology: tpu7x:2x2x1
jax: 0.10.0
libtpu: 0.0.40
codegen_flags: <defaults>
</compile_context>

<pallas_src>
import jax
import jax.numpy as jnp
from jax.experimental import pallas as pl
from jax.experimental.pallas import tpu as pltpu

BN_EPS = 1e-5


def _round_up(n, m):
    return (n + m - 1) // m * m


def _tc_per_chip():
    """Heuristic TensorCore count per chip (2 on v7x, else 1). Safe fallback = 1."""
    try:
        kind = jax.devices()[0].device_kind.lower()
    except Exception:
        return 1
    return 2 if ("v7" in kind or "7x" in kind) else 1


def mlp_kernel(x_ref, w1_ref, wstack_ref, tstack_ref, b6_ref, o_ref):
    """One batch tile of the fused 6-layer MLP (batch-in-lanes layout).

    x_ref      : (b_tile, in_dim)      f32   raw input block (batch in sublanes)
    w1_ref     : (hidden, in_dim)      bf16  BN-folded layer-1 weights
    wstack_ref : (4, hidden, hidden)   bf16  BN-folded layers 2..5
    tstack_ref : (6, hidden, 1)        f32   rows 0..4 = folded shifts, row 5 = fc6 W
    b6_ref     : (1, 1)                f32   fc6 bias
    o_ref      : (1, b_tile)           f32   lane-dense output store
    Dropout (eval mode) between layers 3 and 4 is the identity: nothing emitted.
    """
    xb = x_ref[...].astype(jnp.bfloat16)               # in-kernel cast (VPU)

    # Layer 1: NT matmul (contract last dim with last dim) -> batch moves to lanes.
    z = jax.lax.dot_general(w1_ref[...], xb,
                            (((1,), (1,)), ((), ())),
                            preferred_element_type=jnp.float32)   # (hidden, b_tile)
    a = jnp.maximum(z + tstack_ref[0], 0.0)             # f32 affine + ReLU
    h = a.astype(jnp.bfloat16)                           # bf16 only for the MXU

    # Layers 2..5 (statically unrolled).
    for k in range(4):
        z = jnp.dot(wstack_ref[k], h, preferred_element_type=jnp.float32)
        a = jnp.maximum(z + tstack_ref[k + 1], 0.0)
        h = a.astype(jnp.bfloat16)

    # fc6 (hidden -> 1): lane-dense sublane reduction on VPU/XLU, not a 1-row matvec.
    out = jnp.sum(a * tstack_ref[5], axis=0, keepdims=True) + b6_ref[...]
    o_ref[...] = out.astype(o_ref.dtype)


def mlp_forward(x, kparams, *, b_tile=None):
    """x: (B, in_dim) f32.  kparams: output of fold_params().  Returns (B, 1) f32."""
    B, in_dim = x.shape
    w1, wstack, tstack, b6 = kparams
    assert w1.shape[1] == in_dim

    if b_tile is None:
        # One grid step on single-TC chips; an even 2-step grid on v7x so the
        # "parallel" batch axis actually uses both TensorCores.
        n_splits = 2 if (_tc_per_chip() >= 2 and B >= 256) else 1
        b_tile = _round_up(-(-B // n_splits), 128)
        b_tile = min(b_tile, 4096)          # VMEM headroom for very large batches
    else:
        b_tile = _round_up(min(b_tile, B), 128)

    n_steps = pl.cdiv(B, b_tile)
    Bp = n_steps * b_tile                   # output padded to full lane-dense tiles

    def resident2(p):                       # weights stay VMEM-resident across grid
        return pl.BlockSpec(p.shape, lambda i: (0, 0))

    def resident3(p):
        return pl.BlockSpec(p.shape, lambda i: (0, 0, 0))

    out = pl.pallas_call(
        mlp_kernel,
        out_shape=jax.ShapeDtypeStruct((1, Bp), jnp.float32),
        grid_spec=pltpu.PrefetchScalarGridSpec(
            num_scalar_prefetch=0,
            grid=(n_steps,),
            in_specs=[
                pl.BlockSpec((b_tile, in_dim), lambda i: (i, 0)),   # x streamed, f32
                resident2(w1),
                resident3(wstack),
                resident3(tstack),
                resident2(b6),
            ],
            out_specs=pl.BlockSpec((1, b_tile), lambda i: (0, i)),
        ),
        compiler_params=pltpu.CompilerParams(
            dimension_semantics=("parallel",)),
    )(x, w1, wstack, tstack, b6)

    return out[:, :B].T                     # back to (B, 1)


def init_torch_params(key, input_dim, hidden_dim=32, output_dim=1):
    """PyTorch-style parameters: Linear W:(out,in), b:(out,); BN gamma/beta/mean/var.

    Running stats are randomized (as after training) so the BN folding is exercised.
    """
    dims = [input_dim] + [hidden_dim] * 5 + [output_dim]
    layers = []
    for k in range(5):
        fan_in, fan_out = dims[k], dims[k + 1]
        key, kw, kb, kg, kbe, km, kv = jax.random.split(key, 7)
        bound = 1.0 / float(fan_in) ** 0.5
        W = jax.random.uniform(kw, (fan_out, fan_in), jnp.float32, -bound, bound)
        b = jax.random.uniform(kb, (fan_out,), jnp.float32, -bound, bound)
        gamma = jax.random.uniform(kg, (fan_out,), jnp.float32, 0.5, 1.5)
        beta = 0.1 * jax.random.normal(kbe, (fan_out,), jnp.float32)
        mean = 0.1 * jax.random.normal(km, (fan_out,), jnp.float32)
        var = jax.random.uniform(kv, (fan_out,), jnp.float32, 0.5, 1.5)
        layers.append((W, b, gamma, beta, mean, var))
    fan_in, fan_out = dims[5], dims[6]
    key, kw, kb = jax.random.split(key, 3)
    bound = 1.0 / float(fan_in) ** 0.5
    W6 = jax.random.uniform(kw, (fan_out, fan_in), jnp.float32, -bound, bound)
    b6 = jax.random.uniform(kb, (fan_out,), jnp.float32, -bound, bound)
    return {"layers": layers, "fc6": (W6, b6)}


def fold_params(tp):
    """Fold eval-mode BatchNorm into each Linear; pack params into 4 kernel inputs."""
    folded_w, shifts = [], []
    for (W, b, gamma, beta, mean, var) in tp["layers"]:
        scale = gamma / jnp.sqrt(var + BN_EPS)                     # (out,)
        folded_w.append((W * scale[:, None]).astype(jnp.bfloat16))  # (out, in) bf16
        shifts.append(((b - mean) * scale + beta).astype(jnp.float32))
    W6, b6 = tp["fc6"]
    assert W6.shape[0] == 1, "kernel specializes the final layer to output_dim == 1"
    w1 = folded_w[0]                                               # (hidden, in_dim)
    wstack = jnp.stack(folded_w[1:5])                              # (4, hidden, hidden)
    tstack = jnp.stack(shifts + [W6.reshape(-1).astype(jnp.float32)])[:, :, None]
    b6v = b6.reshape(1, 1).astype(jnp.float32)                     # (1, 1)
    return (w1, wstack, tstack, b6v)


def torch_reference(x, tp):
    """Pure-JAX f32 reference matching the PyTorch eval-mode forward."""
    h = x
    for (W, b, gamma, beta, mean, var) in tp["layers"]:
        z = h @ W.T + b
        z = (z - mean) * (gamma / jnp.sqrt(var + BN_EPS)) + beta
        h = jnp.maximum(z, 0.0)    # dropout2 (eval) between layers 3 & 4: identity
    W6, b6 = tp["fc6"]
    return h @ W6.T + b6


if __name__ == "__main__":
    key = jax.random.PRNGKey(0)
    k_param, k_x = jax.random.split(key)

    batch, input_dim, hidden_dim, output_dim = 200, 16, 32, 1
    tp = init_torch_params(k_param, input_dim, hidden_dim, output_dim)
    kparams = fold_params(tp)
    x = jax.random.normal(k_x, (batch, input_dim), jnp.float32)

    ref = torch_reference(x, tp)

    # Default path: minimal grid (1 step on v5e/v6e, even 2-step on v7x), ragged
    # last tile handled by Pallas partial blocks.
    out = jax.block_until_ready(mlp_forward(x, kparams))
    assert out.shape == (batch, output_dim), out.shape
    # bf16 matmul inputs -> loose-ish tolerance vs the f32 reference.
    assert jnp.allclose(out, ref, atol=5e-2, rtol=5e-2), \
        float(jnp.max(jnp.abs(out - ref)))

    # Coverage of the multi-step grid path (2 steps, ragged last tile).
    out2 = jax.block_until_ready(mlp_forward(x, kparams, b_tile=128))
    assert jnp.allclose(out2, ref, atol=5e-2, rtol=5e-2), \
        float(jnp.max(jnp.abs(out2 - ref)))

    print("KERNEL_OK")
</pallas_src>

<mosaic_0001>
module attributes {stable_mosaic.version = 11 : i64} {
  func.func @mlp_kernel(%arg0: i32, %arg1: memref<256x16xf32, #tpu.memory_space<vmem>>, %arg2: memref<32x16xbf16, #tpu.memory_space<vmem>>, %arg3: memref<4x32x32xbf16, #tpu.memory_space<vmem>>, %arg4: memref<6x32x1xf32, #tpu.memory_space<vmem>>, %arg5: memref<1x1xf32, #tpu.memory_space<vmem>>, %arg6: memref<1x256xf32, #tpu.memory_space<vmem>>) attributes {dimension_semantics = [#tpu.dimension_semantics<parallel>], iteration_bounds = array<i64: 1>, scalar_prefetch = 0 : i64, scratch_operands = 0 : i64, tpu.core_type = #tpu.core_type<tc>, window_params = [{transform_indices = @transform_0, window_bounds = array<i64: 256, 16>}, {pipeline_mode = #tpu.pipeline_mode<synchronous>, transform_indices = @transform_1, window_bounds = array<i64: 32, 16>}, {pipeline_mode = #tpu.pipeline_mode<synchronous>, transform_indices = @transform_2, window_bounds = array<i64: 4, 32, 32>}, {pipeline_mode = #tpu.pipeline_mode<synchronous>, transform_indices = @transform_3, window_bounds = array<i64: 6, 32, 1>}, {pipeline_mode = #tpu.pipeline_mode<synchronous>, transform_indices = @transform_4, window_bounds = array<i64: 1, 1>}, {transform_indices = @transform_5, window_bounds = array<i64: 1, 256>}]} {
    %c0 = arith.constant 0 : index
    %c0_0 = arith.constant 0 : index
    %0 = vector.load %arg1[%c0, %c0_0] : memref<256x16xf32, #tpu.memory_space<vmem>>, vector<256x16xf32>
    %1 = arith.truncf %0 : vector<256x16xf32> to vector<256x16xbf16>
    %c0_1 = arith.constant 0 : index
    %c0_2 = arith.constant 0 : index
    %2 = vector.load %arg2[%c0_1, %c0_2] : memref<32x16xbf16, #tpu.memory_space<vmem>>, vector<32x16xbf16>
    %cst = arith.constant dense<0.000000e+00> : vector<32x256xf32>
    %3 = tpu.matmul %2, %1, %cst {dimension_numbers = #tpu.dot_dimension_numbers<[1], [1], [0], [0], [0, 0, 1, 0], [], []>} : vector<32x16xbf16>, vector<256x16xbf16>, vector<32x256xf32> -> vector<32x256xf32>
    %c0_3 = arith.constant 0 : index
    %c0_4 = arith.constant 0 : index
    %c0_5 = arith.constant 0 : index
    %4 = vector.load %arg4[%c0_3, %c0_4, %c0_5] : memref<6x32x1xf32, #tpu.memory_space<vmem>>, vector<1x32x1xf32>
    %5 = vector.shape_cast %4 : vector<1x32x1xf32> to vector<32x1xf32>
    %6 = vector.broadcast %5 : vector<32x1xf32> to vector<32x256xf32>
    %7 = arith.addf %3, %6 : vector<32x256xf32>
    %cst_6 = arith.constant 0.000000e+00 : f32
    %8 = vector.broadcast %cst_6 : f32 to vector<32x256xf32>
    %9 = arith.maximumf %7, %8 : vector<32x256xf32>
    %10 = arith.truncf %9 : vector<32x256xf32> to vector<32x256xbf16>
    %c0_7 = arith.constant 0 : index
    %c0_8 = arith.constant 0 : index
    %c0_9 = arith.constant 0 : index
    %11 = vector.load %arg3[%c0_7, %c0_8, %c0_9] : memref<4x32x32xbf16, #tpu.memory_space<vmem>>, vector<1x32x32xbf16>
    %12 = vector.shape_cast %11 : vector<1x32x32xbf16> to vector<32x32xbf16>
    %cst_10 = arith.constant dense<0.000000e+00> : vector<32x256xf32>
    %13 = tpu.matmul %12, %10, %cst_10 {dimension_numbers = #tpu.dot_dimension_numbers<[1], [0], [0], [1], [0, 0, 1, 1], [], []>} : vector<32x32xbf16>, vector<32x256xbf16>, vector<32x256xf32> -> vector<32x256xf32>
    %c1 = arith.constant 1 : index
    %c0_11 = arith.constant 0 : index
    %c0_12 = arith.constant 0 : index
    %14 = vector.load %arg4[%c1, %c0_11, %c0_12] : memref<6x32x1xf32, #tpu.memory_space<vmem>>, vector<1x32x1xf32>
    %15 = vector.shape_cast %14 : vector<1x32x1xf32> to vector<32x1xf32>
    %16 = vector.broadcast %15 : vector<32x1xf32> to vector<32x256xf32>
    %17 = arith.addf %13, %16 : vector<32x256xf32>
    %cst_13 = arith.constant 0.000000e+00 : f32
    %18 = vector.broadcast %cst_13 : f32 to vector<32x256xf32>
    %19 = arith.maximumf %17, %18 : vector<32x256xf32>
    %20 = arith.truncf %19 : vector<32x256xf32> to vector<32x256xbf16>
    %c1_14 = arith.constant 1 : index
    %c0_15 = arith.constant 0 : index
    %c0_16 = arith.constant 0 : index
    %21 = vector.load %arg3[%c1_14, %c0_15, %c0_16] : memref<4x32x32xbf16, #tpu.memory_space<vmem>>, vector<1x32x32xbf16>
    %22 = vector.shape_cast %21 : vector<1x32x32xbf16> to vector<32x32xbf16>
    %cst_17 = arith.constant dense<0.000000e+00> : vector<32x256xf32>
    %23 = tpu.matmul %22, %20, %cst_17 {dimension_numbers = #tpu.dot_dimension_numbers<[1], [0], [0], [1], [0, 0, 1, 1], [], []>} : vector<32x32xbf16>, vector<32x256xbf16>, vector<32x256xf32> -> vector<32x256xf32>
    %c2 = arith.constant 2 : index
    %c0_18 = arith.constant 0 : index
    %c0_19 = arith.constant 0 : index
    %24 = vector.load %arg4[%c2, %c0_18, %c0_19] : memref<6x32x1xf32, #tpu.memory_space<vmem>>, vector<1x32x1xf32>
    %25 = vector.shape_cast %24 : vector<1x32x1xf32> to vector<32x1xf32>
    %26 = vector.broadcast %25 : vector<32x1xf32> to vector<32x256xf32>
    %27 = arith.addf %23, %26 : vector<32x256xf32>
    %cst_20 = arith.constant 0.000000e+00 : f32
    %28 = vector.broadcast %cst_20 : f32 to vector<32x256xf32>
    %29 = arith.maximumf %27, %28 : vector<32x256xf32>
    %30 = arith.truncf %29 : vector<32x256xf32> to vector<32x256xbf16>
    %c2_21 = arith.constant 2 : index
    %c0_22 = arith.constant 0 : index
    %c0_23 = arith.constant 0 : index
    %31 = vector.load %arg3[%c2_21, %c0_22, %c0_23] : memref<4x32x32xbf16, #tpu.memory_space<vmem>>, vector<1x32x32xbf16>
    %32 = vector.shape_cast %31 : vector<1x32x32xbf16> to vector<32x32xbf16>
    %cst_24 = arith.constant dense<0.000000e+00> : vector<32x256xf32>
    %33 = tpu.matmul %32, %30, %cst_24 {dimension_numbers = #tpu.dot_dimension_numbers<[1], [0], [0], [1], [0, 0, 1, 1], [], []>} : vector<32x32xbf16>, vector<32x256xbf16>, vector<32x256xf32> -> vector<32x256xf32>
    %c3 = arith.constant 3 : index
    %c0_25 = arith.constant 0 : index
    %c0_26 = arith.constant 0 : index
    %34 = vector.load %arg4[%c3, %c0_25, %c0_26] : memref<6x32x1xf32, #tpu.memory_space<vmem>>, vector<1x32x1xf32>
    %35 = vector.shape_cast %34 : vector<1x32x1xf32> to vector<32x1xf32>
    %36 = vector.broadcast %35 : vector<32x1xf32> to vector<32x256xf32>
    %37 = arith.addf %33, %36 : vector<32x256xf32>
    %cst_27 = arith.constant 0.000000e+00 : f32
    %38 = vector.broadcast %cst_27 : f32 to vector<32x256xf32>
    %39 = arith.maximumf %37, %38 : vector<32x256xf32>
    %40 = arith.truncf %39 : vector<32x256xf32> to vector<32x256xbf16>
    %c3_28 = arith.constant 3 : index
    %c0_29 = arith.constant 0 : index
    %c0_30 = arith.constant 0 : index
    %41 = vector.load %arg3[%c3_28, %c0_29, %c0_30] : memref<4x32x32xbf16, #tpu.memory_space<vmem>>, vector<1x32x32xbf16>
    %42 = vector.shape_cast %41 : vector<1x32x32xbf16> to vector<32x32xbf16>
    %cst_31 = arith.constant dense<0.000000e+00> : vector<32x256xf32>
    %43 = tpu.matmul %42, %40, %cst_31 {dimension_numbers = #tpu.dot_dimension_numbers<[1], [0], [0], [1], [0, 0, 1, 1], [], []>} : vector<32x32xbf16>, vector<32x256xbf16>, vector<32x256xf32> -> vector<32x256xf32>
    %c4 = arith.constant 4 : index
    %c0_32 = arith.constant 0 : index
    %c0_33 = arith.constant 0 : index
    %44 = vector.load %arg4[%c4, %c0_32, %c0_33] : memref<6x32x1xf32, #tpu.memory_space<vmem>>, vector<1x32x1xf32>
    %45 = vector.shape_cast %44 : vector<1x32x1xf32> to vector<32x1xf32>
    %46 = vector.broadcast %45 : vector<32x1xf32> to vector<32x256xf32>
    %47 = arith.addf %43, %46 : vector<32x256xf32>
    %cst_34 = arith.constant 0.000000e+00 : f32
    %48 = vector.broadcast %cst_34 : f32 to vector<32x256xf32>
    %49 = arith.maximumf %47, %48 : vector<32x256xf32>
    %c5 = arith.constant 5 : index
    %c0_35 = arith.constant 0 : index
    %c0_36 = arith.constant 0 : index
    %50 = vector.load %arg4[%c5, %c0_35, %c0_36] : memref<6x32x1xf32, #tpu.memory_space<vmem>>, vector<1x32x1xf32>
    %51 = vector.shape_cast %50 : vector<1x32x1xf32> to vector<32x1xf32>
    %52 = vector.broadcast %51 : vector<32x1xf32> to vector<32x256xf32>
    %53 = arith.mulf %49, %52 : vector<32x256xf32>
    %cst_37 = arith.constant dense<0.000000e+00> : vector<256xf32>
    %54 = vector.multi_reduction <add>, %53, %cst_37 [0] : vector<32x256xf32> to vector<256xf32>
    %55 = vector.shape_cast %54 : vector<256xf32> to vector<1x256xf32>
    %c0_38 = arith.constant 0 : index
    %c0_39 = arith.constant 0 : index
    %56 = vector.load %arg5[%c0_38, %c0_39] : memref<1x1xf32, #tpu.memory_space<vmem>>, vector<1x1xf32>
    %57 = vector.broadcast %56 : vector<1x1xf32> to vector<1x256xf32>
    %58 = arith.addf %55, %57 : vector<1x256xf32>
    %c0_40 = arith.constant 0 : index
    %c0_41 = arith.constant 0 : index
    %59 = vector.load %arg6[%c0_40, %c0_41] : memref<1x256xf32, #tpu.memory_space<vmem>>, vector<1x256xf32>
    tpu.vector_store %arg6[%c0_40, %c0_41], %58 {strides = array<i32>} : memref<1x256xf32, #tpu.memory_space<vmem>>, vector<1x256xf32>,
    return
  }
  func.func @transform_0(%arg0: i32) -> (i32, i32) {
    %c0_i32 = arith.constant 0 : i32
    %c0_i32_0 = arith.constant 0 : i32
    return %arg0, %c0_i32 : i32, i32
  }
  func.func @transform_1(%arg0: i32) -> (i32, i32) {
    %c0_i32 = arith.constant 0 : i32
    %c0_i32_0 = arith.constant 0 : i32
    %c0_i32_1 = arith.constant 0 : i32
    return %c0_i32, %c0_i32_0 : i32, i32
  }
  func.func @transform_2(%arg0: i32) -> (i32, i32, i32) {
    %c0_i32 = arith.constant 0 : i32
    %c0_i32_0 = arith.constant 0 : i32
    %c0_i32_1 = arith.constant 0 : i32
    %c0_i32_2 = arith.constant 0 : i32
    return %c0_i32, %c0_i32_0, %c0_i32_1 : i32, i32, i32
  }
  func.func @transform_3(%arg0: i32) -> (i32, i32, i32) {
    %c0_i32 = arith.constant 0 : i32
    %c0_i32_0 = arith.constant 0 : i32
    %c0_i32_1 = arith.constant 0 : i32
    %c0_i32_2 = arith.constant 0 : i32
    return %c0_i32, %c0_i32_0, %c0_i32_1 : i32, i32, i32
  }
  func.func @transform_4(%arg0: i32) -> (i32, i32) {
    %c0_i32 = arith.constant 0 : i32
    %c0_i32_0 = arith.constant 0 : i32
    %c0_i32_1 = arith.constant 0 : i32
    return %c0_i32, %c0_i32_0 : i32, i32
  }
  func.func @transform_5(%arg0: i32) -> (i32, i32) {
    %c0_i32 = arith.constant 0 : i32
    %c0_i32_0 = arith.constant 0 : i32
    return %c0_i32, %arg0 : i32, i32
  }
}

</mosaic_0001>

<llo_original>
// kernel: tpu_custom_call.1
$region0: #{tpu_custom_call.1}
  #allocation0 [shape = 'u32[]', space=smem, size = 0x4, offset = 0x4, fixed_abs, tag = 'smem constant byte address 0x4 - core index']
  #allocation1 [shape = 'u32[144,128]{1,0:T(1,128)}', space=vmem, size = 0x12000, scoped, tag = 'internal scratch']
  #allocation2 [shape = 'f32[1,1]{1,0:T(1,128)S(1)}', space=vmem, size = 0x200, scoped, tag = 'scoped memory for tpu_custom_call.1']
  %s0 = inlined_call_operand.vmem [shape: f32[200,16], index: 0, kind: input, shape index: {}]
  %s1 = inlined_call_operand.vmem [shape: bf16[32,16], index: 1, kind: input, shape index: {}]
  %s2 = inlined_call_operand.vmem [shape: bf16[4,32,32], index: 2, kind: input, shape index: {}]
  %s3 = inlined_call_operand.vmem [shape: f32[6,32,1], index: 3, kind: input, shape index: {}]
  %s4 = inlined_call_operand.<no memory space> [shape: f32[1,1], index: 4, kind: input, shape index: {}]
  %s5 = inlined_call_operand.hbm [shape: f32[1,256], index: 5, kind: output, shape index: {}]
  %s6 = sld [smem:[#allocation0]]
  $region30: #{tpu_custom_call.1} parent=0
    _
  %s8 = ssub.s32 1, %s6
  %s9 = scalar_select 0, %s8, %s6
  %v10 = vstv %s4
  %11 = vst [vmem:[#allocation2] sm:$0x1] %v10
  $region1: #{tpu_custom_call.1} parent=0
    #allocation3 [shape = 'u8[1024]{0}', space=vmem, size = 0x400, scoped, tag = 'output window, operand 0, single buffered']
    #allocation4 [shape = 's32[1]{0}', space=sflag, size = 0x4, scoped, tag = 'scoped memory for tpu_custom_call.1']
    %12 = vsyncpa [#allocation4], 0
    // Predicated region
    $region2: #{tpu_custom_call.1} parent=1 // pred_check
      _
    $region3: #{tpu_custom_call.1} parent=1 // pred_check_branch
      %14 = sbr.rel (0) target = $region5
    $region4: #{tpu_custom_call.1} parent=1 // pred_region
      _
    $region5: #{tpu_custom_call.1} parent=1 // pred_fallthru
      _
    // Predicated region
    $region6: #{tpu_custom_call.1} parent=1 // pred_check
      _
    $region7: #{tpu_custom_call.1} parent=1 // pred_check_branch
      %16 = sbr.rel (0) target = $region9
    $region8: #{tpu_custom_call.1} parent=1 // pred_region
      _
    $region9: #{tpu_custom_call.1} parent=1 // pred_fallthru
      _
    // Predicated region
    $region10: #{tpu_custom_call.1} parent=1 // pred_check
      _
    $region11: #{tpu_custom_call.1} parent=1 // pred_check_branch
      %18 = sbr.rel (0) target = $region13
    $region12: #{tpu_custom_call.1} parent=1 // pred_region
      _
    $region13: #{tpu_custom_call.1} parent=1 // pred_fallthru
      _
    // Predicated region
    $region14: #{tpu_custom_call.1} parent=1 // pred_check
      _
    $region15: #{tpu_custom_call.1} parent=1 // pred_check_branch
      %20 = sbr.rel (0) target = $region17
    $region16: #{tpu_custom_call.1} parent=1 // pred_region
      _
    $region17: #{tpu_custom_call.1} parent=1 // pred_fallthru
      _
    // Predicated region
    $region18: #{tpu_custom_call.1} parent=1 // pred_check
      _
    $region19: #{tpu_custom_call.1} parent=1 // pred_check_branch
      %22 = sbr.rel (0) target = $region21
    $region20: #{tpu_custom_call.1} parent=1 // pred_region
      _
    $region21: #{tpu_custom_call.1} parent=1 // pred_fallthru
      _
    %v24 = vld [vmem:[%s0] sm:$0xff]
    %v25 = vld [vmem:[%s0 + $0x8] sm:$0xff]
    %v26 = vld [vmem:[%s0 + $0x10] sm:$0xff]
    %v27 = vld [vmem:[%s0 + $0x18] sm:$0xff]
    %v28 = vld [vmem:[%s0 + $0x20] sm:$0xff]
    %v29 = vld [vmem:[%s0 + $0x28] sm:$0xff]
    %v30 = vld [vmem:[%s0 + $0x30] sm:$0xff]
    %v31 = vld [vmem:[%s0 + $0x38] sm:$0xff]
    %v32 = vld [vmem:[%s0 + $0x40] sm:$0xff]
    %v33 = vld [vmem:[%s0 + $0x48] sm:$0xff]
    %v34 = vld [vmem:[%s0 + $0x50] sm:$0xff]
    %v35 = vld [vmem:[%s0 + $0x58] sm:$0xff]
    %v36 = vld [vmem:[%s0 + $0x60] sm:$0xff]
    %v37 = vld [vmem:[%s0 + $0x68] sm:$0xff]
    %v38 = vld [vmem:[%s0 + $0x70] sm:$0xff]
    %v39 = vld [vmem:[%s0 + $0x78] sm:$0xff]
    %v40 = vld [vmem:[%s0 + $0x80] sm:$0xff]
    %v41 = vld [vmem:[%s0 + $0x88] sm:$0xff]
    %v42 = vld [vmem:[%s0 + $0x90] sm:$0xff]
    %v43 = vld [vmem:[%s0 + $0x98] sm:$0xff]
    %v44 = vld [vmem:[%s0 + $0xa0] sm:$0xff]
    %v45 = vld [vmem:[%s0 + $0xa8] sm:$0xff]
    %v46 = vld [vmem:[%s0 + $0xb0] sm:$0xff]
    %v47 = vld [vmem:[%s0 + $0xb8] sm:$0xff]
    %v48 = vld [vmem:[%s0 + $0xc0] sm:$0xff]
    %v49 = vld [vmem:[%s0 + $0xc8] sm:$0xff]
    %v50 = vld [vmem:[%s0 + $0xd0] sm:$0xff]
    %v51 = vld [vmem:[%s0 + $0xd8] sm:$0xff]
    %v52 = vld [vmem:[%s0 + $0xe0] sm:$0xff]
    %v53 = vld [vmem:[%s0 + $0xe8] sm:$0xff]
    %v54 = vld [vmem:[%s0 + $0xf0] sm:$0xff]
    %v55 = vld [vmem:[%s0 + $0xf8] sm:$0xff]
    %v56 = vpack.c.bf16 %v25, %v24
    %v57 = vpack.c.bf16 %v27, %v26
    %v58 = vpack.c.bf16 %v29, %v28
    %v59 = vpack.c.bf16 %v31, %v30
    %v60 = vpack.c.bf16 %v33, %v32
    %v61 = vpack.c.bf16 %v35, %v34
    %v62 = vpack.c.bf16 %v37, %v36
    %v63 = vpack.c.bf16 %v39, %v38
    %v64 = vpack.c.bf16 %v41, %v40
    %v65 = vpack.c.bf16 %v43, %v42
    %v66 = vpack.c.bf16 %v45, %v44
    %v67 = vpack.c.bf16 %v47, %v46
    %v68 = vpack.c.bf16 %v49, %v48
    %v69 = vpack.c.bf16 %v51, %v50
    %v70 = vpack.c.bf16 %v53, %v52
    %v71 = vpack.c.bf16 %v55, %v54
    %v72 = vld [vmem:[%s1] sm:$0xf]
    %v73 = vld [vmem:[%s1 + $0x4] sm:$0xf]
    %v74 = vld [vmem:[%s1 + $0x8] sm:$0xf]
    %v75 = vld [vmem:[%s1 + $0xc] sm:$0xf]
    %v76 = vld [vmem:[%s3] sm:$0xff]
    %v77 = vld [vmem:[%s3 + $0x8] sm:$0xff]
    %v78 = vld [vmem:[%s3 + $0x10] sm:$0xff]
    %v79 = vld [vmem:[%s3 + $0x18] sm:$0xff]
    %81 = vset.pattern.permute.xlu0 0
    %82 = vperm.xlu0 %81, %v76
    %v83 = vpop.permute.xlu0 %82
    %86 = vset.pattern.permute.xlu0 0
    %87 = vperm.xlu0 %86, %v77
    %v88 = vpop.permute.xlu0 %87
    %91 = vset.pattern.permute.xlu0 0
    %92 = vperm.xlu0 %91, %v78
    %v93 = vpop.permute.xlu0 %92
    %96 = vset.pattern.permute.xlu0 0
    %97 = vperm.xlu0 %96, %v79
    %v98 = vpop.permute.xlu0 %97
    %v104 = vunpack.c.l.b16 %v72
    %v105 = vunpack.c.l.b16 %v73
    %v106 = vunpack.c.l.b16 %v74
    %v107 = vunpack.c.l.b16 %v75
    %v108 = vpack.c.b16 %v105, %v104
    %v109 = vpack.c.b16 %v107, %v106
    %vm110 = vcmask 130048
    %v112 = vsel %vm110, %v108, 0
    %v115 = vsel %vm110, %v109, 0
    %v118 = vsel %vm110, %v56, 0
    %v121 = vsel %vm110, %v57, 0
    %v124 = vsel %vm110, %v58, 0
    %v127 = vsel %vm110, %v59, 0
    %v130 = vsel %vm110, %v60, 0
    %v133 = vsel %vm110, %v61, 0
    %v136 = vsel %vm110, %v62, 0
    %v139 = vsel %vm110, %v63, 0
    %v142 = vsel %vm110, %v64, 0
    %v145 = vsel %vm110, %v65, 0
    %v148 = vsel %vm110, %v66, 0
    %v151 = vsel %vm110, %v67, 0
    %v154 = vsel %vm110, %v68, 0
    %v157 = vsel %vm110, %v69, 0
    %v160 = vsel %vm110, %v70, 0
    %v163 = vsel %vm110, %v71, 0
    %165 = vmatprep.subr.bf16.mxu0 0
    %166 = vmatpush1.bf16.xpose.msra.mxu0 %v118
    %167 = vmatprep.subr.bf16.mxu0 0
    %168 = vmatpush1.bf16.xpose.msra.mxu0 %v121
    %169 = vmatprep.subr.bf16.mxu0 0
    %170 = vmatpush1.bf16.xpose.msra.mxu0 %v124
    %171 = vmatprep.subr.bf16.mxu0 0
    %172 = vmatpush1.bf16.xpose.msra.mxu0 %v127
    %173 = vmatprep.subr.bf16.mxu0 0
    %174 = vmatpush1.bf16.xpose.msra.mxu0 %v130
    %175 = vmatprep.subr.bf16.mxu0 0
    %176 = vmatpush1.bf16.xpose.msra.mxu0 %v133
    %177 = vmatprep.subr.bf16.mxu0 0
    %178 = vmatpush1.bf16.xpose.msra.mxu0 %v136
    %179 = vmatprep.subr.bf16.mxu0 0
    %180 = vmatpush1.bf16.xpose.msra.mxu0 %v139
    %181 = vmatprep.subr.bf16.mxu0 0
    %182 = vmatpush1.bf16.xpose.msra.mxu0 %v142
    %183 = vmatprep.subr.bf16.mxu0 0
    %184 = vmatpush1.bf16.xpose.msra.mxu0 %v145
    %185 = vmatprep.subr.bf16.mxu0 0
    %186 = vmatpush1.bf16.xpose.msra.mxu0 %v148
    %187 = vmatprep.subr.bf16.mxu0 0
    %188 = vmatpush1.bf16.xpose.msra.mxu0 %v151
    %189 = vmatprep.subr.bf16.mxu0 0
    %190 = vmatpush1.bf16.xpose.msra.mxu0 %v154
    %191 = vmatprep.subr.bf16.mxu0 0
    %192 = vmatpush1.bf16.xpose.msra.mxu0 %v157
    %193 = vmatprep.subr.bf16.mxu0 0
    %194 = vmatpush1.bf16.xpose.msra.mxu0 %v160
    %195 = vmatprep.subr.bf16.mxu0 0
    %196 = vmatpush1.bf16.xpose.msra.mxu0 %v163
    %197 = vmatprep.mubr.bf16.mxu0 0
    %198 = vmatmul.mubr.bf16.gmra.mrb[0].mxu0 %v112
    %v199 = vpop.f32.mrb[0].mxu0
    %v200 = vadd.f32 %v83, %v199
    %v201 = vpop.f32.mrb[0].mxu0
    %v202 = vadd.f32 %v83, %v201
    %v203 = vpop.f32.mrb[0].mxu0
    %v204 = vadd.f32 %v88, %v203
    %v205 = vpop.f32.mrb[0].mxu0
    %v206 = vadd.f32 %v88, %v205
    %207 = vmatprep.mubr.bf16.mxu0 0
    %208 = vmatmul.mubr.bf16.gmra.mrb[0].mxu0 %v115
    %v209 = vpop.f32.mrb[0].mxu0
    %v210 = vadd.f32 %v93, %v209
    %v211 = vpop.f32.mrb[0].mxu0
    %v212 = vadd.f32 %v93, %v211
    %v213 = vpop.f32.mrb[0].mxu0
    %v214 = vadd.f32 %v98, %v213
    %v215 = vpop.f32.mrb[0].mxu0
    %v216 = vadd.f32 %v98, %v215
    %217 = vdwg.mxu0
    %v218 = vmax.f32 %v200, 0.0
    %v219 = vmax.f32 %v202, 0.0
    %v220 = vmax.f32 %v204, 0.0
    %v221 = vmax.f32 %v206, 0.0
    %v222 = vmax.f32 %v210, 0.0
    %v223 = vmax.f32 %v212, 0.0
    %v224 = vmax.f32 %v214, 0.0
    %v225 = vmax.f32 %v216, 0.0
    %v226 = vpack.c.bf16 %v220, %v218
    %v227 = vpack.c.bf16 %v221, %v219
    %v228 = vpack.c.bf16 %v224, %v222
    %v229 = vpack.c.bf16 %v225, %v223
    %v230 = vld [vmem:[%s2] sm:$0xf]
    %v231 = vld [vmem:[%s2 + $0x4] sm:$0xf]
    %v232 = vld [vmem:[%s2 + $0x8] sm:$0xf]
    %v233 = vld [vmem:[%s2 + $0xc] sm:$0xf]
    %s234 = scalar_lea.vmem %s3, 32
    %v235 = vld [vmem:[%s234] sm:$0xff]
    %v236 = vld [vmem:[%s234 + $0x8] sm:$0xff]
    %v237 = vld [vmem:[%s234 + $0x10] sm:$0xff]
    %v238 = vld [vmem:[%s234 + $0x18] sm:$0xff]
    %240 = vset.pattern.permute.xlu0 0
    %241 = vperm.xlu0 %240, %v235
    %v242 = vpop.permute.xlu0 %241
    %245 = vset.pattern.permute.xlu0 0
    %246 = vperm.xlu0 %245, %v236
    %v247 = vpop.permute.xlu0 %246
    %250 = vset.pattern.permute.xlu0 0
    %251 = vperm.xlu0 %250, %v237
    %v252 = vpop.permute.xlu0 %251
    %255 = vset.pattern.permute.xlu0 0
    %256 = vperm.xlu0 %255, %v238
    %v257 = vpop.permute.xlu0 %256
    %v263 = vunpack.c.l.b16 %v230
    %v264 = vunpack.c.l.b16 %v231
    %v265 = vunpack.c.l.b16 %v232
    %v266 = vunpack.c.l.b16 %v233
    %v267 = vpack.c.b16 %v264, %v263
    %v268 = vpack.c.b16 %v266, %v265
    %vm269 = vcmask 261120
    %v271 = vsel %vm269, %v267, 0
    %v274 = vsel %vm269, %v268, 0
    %276 = vmatprep.subr.bf16.mxu0 %v227
    %277 = vmatpush1.bf16.msra.mxu0 %v226
    %278 = vmatprep.subr.bf16.mxu0 %v229
    %279 = vmatpush1.bf16.msra.mxu0 %v228
    %280 = vmatprep.subr.bf16.mxu0 0
    %281 = vmatpush1.bf16.msra.mxu0 0
    %282 = vmatprep.subr.bf16.mxu0 0
    %283 = vmatpush1.bf16.msra.mxu0 0
    %284 = vmatprep.subr.bf16.mxu0 0
    %285 = vmatpush1.bf16.msra.mxu0 0
    %286 = vmatprep.subr.bf16.mxu0 0
    %287 = vmatpush1.bf16.msra.mxu0 0
    %288 = vmatprep.subr.bf16.mxu0 0
    %289 = vmatpush1.bf16.msra.mxu0 0
    %290 = vmatprep.subr.bf16.mxu0 0
    %291 = vmatpush1.bf16.msra.mxu0 0
    %292 = vmatprep.subr.bf16.mxu0 0
    %293 = vmatpush1.bf16.msra.mxu0 0
    %294 = vmatprep.subr.bf16.mxu0 0
    %295 = vmatpush1.bf16.msra.mxu0 0
    %296 = vmatprep.subr.bf16.mxu0 0
    %297 = vmatpush1.bf16.msra.mxu0 0
    %298 = vmatprep.subr.bf16.mxu0 0
    %299 = vmatpush1.bf16.msra.mxu0 0
    %300 = vmatprep.subr.bf16.mxu0 0
    %301 = vmatpush1.bf16.msra.mxu0 0
    %302 = vmatprep.subr.bf16.mxu0 0
    %303 = vmatpush1.bf16.msra.mxu0 0
    %304 = vmatprep.subr.bf16.mxu0 0
    %305 = vmatpush1.bf16.msra.mxu0 0
    %306 = vmatprep.subr.bf16.mxu0 0
    %307 = vmatpush1.bf16.msra.mxu0 0
    %308 = vmatprep.mubr.bf16.mxu0 0
    %309 = vmatmul.mubr.bf16.gmra.mrb[0].mxu0 %v271
    %v310 = vpop.f32.mrb[0].mxu0
    %v311 = vadd.f32 %v242, %v310
    %v312 = vpop.f32.mrb[0].mxu0
    %v313 = vadd.f32 %v242, %v312
    %v314 = vpop.f32.mrb[0].mxu0
    %v315 = vadd.f32 %v247, %v314
    %v316 = vpop.f32.mrb[0].mxu0
    %v317 = vadd.f32 %v247, %v316
    %318 = vmatprep.mubr.bf16.mxu0 0
    %319 = vmatmul.mubr.bf16.gmra.mrb[0].mxu0 %v274
    %v320 = vpop.f32.mrb[0].mxu0
    %v321 = vadd.f32 %v252, %v320
    %v322 = vpop.f32.mrb[0].mxu0
    %v323 = vadd.f32 %v252, %v322
    %v324 = vpop.f32.mrb[0].mxu0
    %v325 = vadd.f32 %v257, %v324
    %v326 = vpop.f32.mrb[0].mxu0
    %v327 = vadd.f32 %v257, %v326
    %328 = vdwg.mxu0
    %v329 = vmax.f32 %v311, 0.0
    %v330 = vmax.f32 %v313, 0.0
    %v331 = vmax.f32 %v315, 0.0
    %v332 = vmax.f32 %v317, 0.0
    %v333 = vmax.f32 %v321, 0.0
    %v334 = vmax.f32 %v323, 0.0
    %v335 = vmax.f32 %v325, 0.0
    %v336 = vmax.f32 %v327, 0.0
    %v337 = vpack.c.bf16 %v331, %v329
    %v338 = vpack.c.bf16 %v332, %v330
    %v339 = vpack.c.bf16 %v335, %v333
    %v340 = vpack.c.bf16 %v336, %v334
    %s341 = scalar_lea.vmem %s2, 16
    %v342 = vld [vmem:[%s341] sm:$0xf]
    %v343 = vld [vmem:[%s341 + $0x4] sm:$0xf]
    %v344 = vld [vmem:[%s341 + $0x8] sm:$0xf]
    %v345 = vld [vmem:[%s341 + $0xc] sm:$0xf]
    %s346 = scalar_lea.vmem %s3, 64
    %v347 = vld [vmem:[%s346] sm:$0xff]
    %v348 = vld [vmem:[%s346 + $0x8] sm:$0xff]
    %v349 = vld [vmem:[%s346 + $0x10] sm:$0xff]
    %v350 = vld [vmem:[%s346 + $0x18] sm:$0xff]
    %352 = vset.pattern.permute.xlu0 0
    %353 = vperm.xlu0 %352, %v347
    %v354 = vpop.permute.xlu0 %353
    %357 = vset.pattern.permute.xlu0 0
    %358 = vperm.xlu0 %357, %v348
    %v359 = vpop.permute.xlu0 %358
    %362 = vset.pattern.permute.xlu0 0
    %363 = vperm.xlu0 %362, %v349
    %v364 = vpop.permute.xlu0 %363
    %367 = vset.pattern.permute.xlu0 0
    %368 = vperm.xlu0 %367, %v350
    %v369 = vpop.permute.xlu0 %368
    %v375 = vunpack.c.l.b16 %v342
    %v376 = vunpack.c.l.b16 %v343
    %v377 = vunpack.c.l.b16 %v344
    %v378 = vunpack.c.l.b16 %v345
    %v379 = vpack.c.b16 %v376, %v375
    %v380 = vpack.c.b16 %v378, %v377
    %v382 = vsel %vm269, %v379, 0
    %v385 = vsel %vm269, %v380, 0
    %387 = vmatprep.subr.bf16.mxu0 %v338
    %388 = vmatpush1.bf16.msra.mxu0 %v337
    %389 = vmatprep.subr.bf16.mxu0 %v340
    %390 = vmatpush1.bf16.msra.mxu0 %v339
    %391 = vmatprep.subr.bf16.mxu0 0
    %392 = vmatpush1.bf16.msra.mxu0 0
    %393 = vmatprep.subr.bf16.mxu0 0
    %394 = vmatpush1.bf16.msra.mxu0 0
    %395 = vmatprep.subr.bf16.mxu0 0
    %396 = vmatpush1.bf16.msra.mxu0 0
    %397 = vmatprep.subr.bf16.mxu0 0
    %398 = vmatpush1.bf16.msra.mxu0 0
    %399 = vmatprep.subr.bf16.mxu0 0
    %400 = vmatpush1.bf16.msra.mxu0 0
    %401 = vmatprep.subr.bf16.mxu0 0
    %402 = vmatpush1.bf16.msra.mxu0 0
    %403 = vmatprep.subr.bf16.mxu0 0
    %404 = vmatpush1.bf16.msra.mxu0 0
    %405 = vmatprep.subr.bf16.mxu0 0
    %406 = vmatpush1.bf16.msra.mxu0 0
    %407 = vmatprep.subr.bf16.mxu0 0
    %408 = vmatpush1.bf16.msra.mxu0 0
    %409 = vmatprep.subr.bf16.mxu0 0
    %410 = vmatpush1.bf16.msra.mxu0 0
    %411 = vmatprep.subr.bf16.mxu0 0
    %412 = vmatpush1.bf16.msra.mxu0 0
    %413 = vmatprep.subr.bf16.mxu0 0
    %414 = vmatpush1.bf16.msra.mxu0 0
    %415 = vmatprep.subr.bf16.mxu0 0
    %416 = vmatpush1.bf16.msra.mxu0 0
    %417 = vmatprep.subr.bf16.mxu0 0
    %418 = vmatpush1.bf16.msra.mxu0 0
    %419 = vmatprep.mubr.bf16.mxu0 0
    %420 = vmatmul.mubr.bf16.gmra.mrb[0].mxu0 %v382
    %v421 = vpop.f32.mrb[0].mxu0
    %v422 = vadd.f32 %v354, %v421
    %v423 = vpop.f32.mrb[0].mxu0
    %v424 = vadd.f32 %v354, %v423
    %v425 = vpop.f32.mrb[0].mxu0
    %v426 = vadd.f32 %v359, %v425
    %v427 = vpop.f32.mrb[0].mxu0
    %v428 = vadd.f32 %v359, %v427
    %429 = vmatprep.mubr.bf16.mxu0 0
    %430 = vmatmul.mubr.bf16.gmra.mrb[0].mxu0 %v385
    %v431 = vpop.f32.mrb[0].mxu0
    %v432 = vadd.f32 %v364, %v431
    %v433 = vpop.f32.mrb[0].mxu0
    %v434 = vadd.f32 %v364, %v433
    %v435 = vpop.f32.mrb[0].mxu0
    %v436 = vadd.f32 %v369, %v435
    %v437 = vpop.f32.mrb[0].mxu0
    %v438 = vadd.f32 %v369, %v437
    %439 = vdwg.mxu0
    %v440 = vmax.f32 %v422, 0.0
    %v441 = vmax.f32 %v424, 0.0
    %v442 = vmax.f32 %v426, 0.0
    %v443 = vmax.f32 %v428, 0.0
    %v444 = vmax.f32 %v432, 0.0
    %v445 = vmax.f32 %v434, 0.0
    %v446 = vmax.f32 %v436, 0.0
    %v447 = vmax.f32 %v438, 0.0
    %v448 = vpack.c.bf16 %v442, %v440
    %v449 = vpack.c.bf16 %v443, %v441
    %v450 = vpack.c.bf16 %v446, %v444
    %v451 = vpack.c.bf16 %v447, %v445
    %s452 = scalar_lea.vmem %s2, 32
    %v453 = vld [vmem:[%s452] sm:$0xf]
    %v454 = vld [vmem:[%s452 + $0x4] sm:$0xf]
    %v455 = vld [vmem:[%s452 + $0x8] sm:$0xf]
    %v456 = vld [vmem:[%s452 + $0xc] sm:$0xf]
    %s457 = scalar_lea.vmem %s3, 96
    %v458 = vld [vmem:[%s457] sm:$0xff]
    %v459 = vld [vmem:[%s457 + $0x8] sm:$0xff]
    %v460 = vld [vmem:[%s457 + $0x10] sm:$0xff]
    %v461 = vld [vmem:[%s457 + $0x18] sm:$0xff]
    %463 = vset.pattern.permute.xlu0 0
    %464 = vperm.xlu0 %463, %v458
    %v465 = vpop.permute.xlu0 %464
    %468 = vset.pattern.permute.xlu0 0
    %469 = vperm.xlu0 %468, %v459
    %v470 = vpop.permute.xlu0 %469
    %473 = vset.pattern.permute.xlu0 0
    %474 = vperm.xlu0 %473, %v460
    %v475 = vpop.permute.xlu0 %474
    %478 = vset.pattern.permute.xlu0 0
    %479 = vperm.xlu0 %478, %v461
    %v480 = vpop.permute.xlu0 %479
    %v486 = vunpack.c.l.b16 %v453
    %v487 = vunpack.c.l.b16 %v454
    %v488 = vunpack.c.l.b16 %v455
    %v489 = vunpack.c.l.b16 %v456
    %v490 = vpack.c.b16 %v487, %v486
    %v491 = vpack.c.b16 %v489, %v488
    %v493 = vsel %vm269, %v490, 0
    %v496 = vsel %vm269, %v491, 0
    %498 = vmatprep.subr.bf16.mxu0 %v449
    %499 = vmatpush1.bf16.msra.mxu0 %v448
    %500 = vmatprep.subr.bf16.mxu0 %v451
    %501 = vmatpush1.bf16.msra.mxu0 %v450
    %502 = vmatprep.subr.bf16.mxu0 0
    %503 = vmatpush1.bf16.msra.mxu0 0
    %504 = vmatprep.subr.bf16.mxu0 0
    %505 = vmatpush1.bf16.msra.mxu0 0
    %506 = vmatprep.subr.bf16.mxu0 0
    %507 = vmatpush1.bf16.msra.mxu0 0
    %508 = vmatprep.subr.bf16.mxu0 0
    %509 = vmatpush1.bf16.msra.mxu0 0
    %510 = vmatprep.subr.bf16.mxu0 0
    %511 = vmatpush1.bf16.msra.mxu0 0
    %512 = vmatprep.subr.bf16.mxu0 0
    %513 = vmatpush1.bf16.msra.mxu0 0
    %514 = vmatprep.subr.bf16.mxu0 0
    %515 = vmatpush1.bf16.msra.mxu0 0
    %516 = vmatprep.subr.bf16.mxu0 0
    %517 = vmatpush1.bf16.msra.mxu0 0
    %518 = vmatprep.subr.bf16.mxu0 0
    %519 = vmatpush1.bf16.msra.mxu0 0
    %520 = vmatprep.subr.bf16.mxu0 0
    %521 = vmatpush1.bf16.msra.mxu0 0
    %522 = vmatprep.subr.bf16.mxu0 0
    %523 = vmatpush1.bf16.msra.mxu0 0
    %524 = vmatprep.subr.bf16.mxu0 0
    %525 = vmatpush1.bf16.msra.mxu0 0
    %526 = vmatprep.subr.bf16.mxu0 0
    %527 = vmatpush1.bf16.msra.mxu0 0
    %528 = vmatprep.subr.bf16.mxu0 0
    %529 = vmatpush1.bf16.msra.mxu0 0
    %530 = vmatprep.mubr.bf16.mxu0 0
    %531 = vmatmul.mubr.bf16.gmra.mrb[0].mxu0 %v493
    %v532 = vpop.f32.mrb[0].mxu0
    %v533 = vadd.f32 %v465, %v532
    %v534 = vpop.f32.mrb[0].mxu0
    %v535 = vadd.f32 %v465, %v534
    %v536 = vpop.f32.mrb[0].mxu0
    %v537 = vadd.f32 %v470, %v536
    %v538 = vpop.f32.mrb[0].mxu0
    %v539 = vadd.f32 %v470, %v538
    %540 = vmatprep.mubr.bf16.mxu0 0
    %541 = vmatmul.mubr.bf16.gmra.mrb[0].mxu0 %v496
    %v542 = vpop.f32.mrb[0].mxu0
    %v543 = vadd.f32 %v475, %v542
    %v544 = vpop.f32.mrb[0].mxu0
    %v545 = vadd.f32 %v475, %v544
    %v546 = vpop.f32.mrb[0].mxu0
    %v547 = vadd.f32 %v480, %v546
    %v548 = vpop.f32.mrb[0].mxu0
    %v549 = vadd.f32 %v480, %v548
    %550 = vdwg.mxu0
    %v551 = vmax.f32 %v533, 0.0
    %v552 = vmax.f32 %v535, 0.0
    %v553 = vmax.f32 %v537, 0.0
    %v554 = vmax.f32 %v539, 0.0
    %v555 = vmax.f32 %v543, 0.0
    %v556 = vmax.f32 %v545, 0.0
    %v557 = vmax.f32 %v547, 0.0
    %v558 = vmax.f32 %v549, 0.0
    %v559 = vpack.c.bf16 %v553, %v551
    %v560 = vpack.c.bf16 %v554, %v552
    %v561 = vpack.c.bf16 %v557, %v555
    %v562 = vpack.c.bf16 %v558, %v556
    %s563 = scalar_lea.vmem %s2, 48
    %v564 = vld [vmem:[%s563] sm:$0xf]
    %v565 = vld [vmem:[%s563 + $0x4] sm:$0xf]
    %v566 = vld [vmem:[%s563 + $0x8] sm:$0xf]
    %v567 = vld [vmem:[%s563 + $0xc] sm:$0xf]
    %s568 = scalar_lea.vmem %s3, 128
    %v569 = vld [vmem:[%s568] sm:$0xff]
    %v570 = vld [vmem:[%s568 + $0x8] sm:$0xff]
    %v571 = vld [vmem:[%s568 + $0x10] sm:$0xff]
    %v572 = vld [vmem:[%s568 + $0x18] sm:$0xff]
    %574 = vset.pattern.permute.xlu0 0
    %575 = vperm.xlu0 %574, %v569
    %v576 = vpop.permute.xlu0 %575
    %579 = vset.pattern.permute.xlu0 0
    %580 = vperm.xlu0 %579, %v570
    %v581 = vpop.permute.xlu0 %580
    %584 = vset.pattern.permute.xlu0 0
    %585 = vperm.xlu0 %584, %v571
    %v586 = vpop.permute.xlu0 %585
    %589 = vset.pattern.permute.xlu0 0
    %590 = vperm.xlu0 %589, %v572
    %v591 = vpop.permute.xlu0 %590
    %v597 = vunpack.c.l.b16 %v564
    %v598 = vunpack.c.l.b16 %v565
    %v599 = vunpack.c.l.b16 %v566
    %v600 = vunpack.c.l.b16 %v567
    %v601 = vpack.c.b16 %v598, %v597
    %v602 = vpack.c.b16 %v600, %v599
    %v604 = vsel %vm269, %v601, 0
    %v607 = vsel %vm269, %v602, 0
    %609 = vmatprep.subr.bf16.mxu0 %v560
    %610 = vmatpush1.bf16.msra.mxu0 %v559
    %611 = vmatprep.subr.bf16.mxu0 %v562
    %612 = vmatpush1.bf16.msra.mxu0 %v561
    %613 = vmatprep.subr.bf16.mxu0 0
    %614 = vmatpush1.bf16.msra.mxu0 0
    %615 = vmatprep.subr.bf16.mxu0 0
    %616 = vmatpush1.bf16.msra.mxu0 0
    %617 = vmatprep.subr.bf16.mxu0 0
    %618 = vmatpush1.bf16.msra.mxu0 0
    %619 = vmatprep.subr.bf16.mxu0 0
    %620 = vmatpush1.bf16.msra.mxu0 0
    %621 = vmatprep.subr.bf16.mxu0 0
    %622 = vmatpush1.bf16.msra.mxu0 0
    %623 = vmatprep.subr.bf16.mxu0 0
    %624 = vmatpush1.bf16.msra.mxu0 0
    %625 = vmatprep.subr.bf16.mxu0 0
    %626 = vmatpush1.bf16.msra.mxu0 0
    %627 = vmatprep.subr.bf16.mxu0 0
    %628 = vmatpush1.bf16.msra.mxu0 0
    %629 = vmatprep.subr.bf16.mxu0 0
    %630 = vmatpush1.bf16.msra.mxu0 0
    %631 = vmatprep.subr.bf16.mxu0 0
    %632 = vmatpush1.bf16.msra.mxu0 0
    %633 = vmatprep.subr.bf16.mxu0 0
    %634 = vmatpush1.bf16.msra.mxu0 0
    %635 = vmatprep.subr.bf16.mxu0 0
    %636 = vmatpush1.bf16.msra.mxu0 0
    %637 = vmatprep.subr.bf16.mxu0 0
    %638 = vmatpush1.bf16.msra.mxu0 0
    %639 = vmatprep.subr.bf16.mxu0 0
    %640 = vmatpush1.bf16.msra.mxu0 0
    %641 = vmatprep.mubr.bf16.mxu0 0
    %642 = vmatmul.mubr.bf16.gmra.mrb[0].mxu0 %v604
    %v643 = vpop.f32.mrb[0].mxu0
    %v644 = vadd.f32 %v576, %v643
    %v645 = vpop.f32.mrb[0].mxu0
    %v646 = vadd.f32 %v576, %v645
    %v647 = vpop.f32.mrb[0].mxu0
    %v648 = vadd.f32 %v581, %v647
    %v649 = vpop.f32.mrb[0].mxu0
    %v650 = vadd.f32 %v581, %v649
    %651 = vmatprep.mubr.bf16.mxu0 0
    %652 = vmatmul.mubr.bf16.gmra.mrb[0].mxu0 %v607
    %v653 = vpop.f32.mrb[0].mxu0
    %v654 = vadd.f32 %v586, %v653
    %v655 = vpop.f32.mrb[0].mxu0
    %v656 = vadd.f32 %v586, %v655
    %v657 = vpop.f32.mrb[0].mxu0
    %v658 = vadd.f32 %v591, %v657
    %v659 = vpop.f32.mrb[0].mxu0
    %v660 = vadd.f32 %v591, %v659
    %661 = vdwg.mxu0
    %v662 = vmax.f32 %v644, 0.0
    %v663 = vmax.f32 %v646, 0.0
    %v664 = vmax.f32 %v648, 0.0
    %v665 = vmax.f32 %v650, 0.0
    %v666 = vmax.f32 %v654, 0.0
    %v667 = vmax.f32 %v656, 0.0
    %v668 = vmax.f32 %v658, 0.0
    %v669 = vmax.f32 %v660, 0.0
    %s670 = scalar_lea.vmem %s3, 160
    %v671 = vld [vmem:[%s670] sm:$0xff]
    %v672 = vld [vmem:[%s670 + $0x8] sm:$0xff]
    %v673 = vld [vmem:[%s670 + $0x10] sm:$0xff]
    %v674 = vld [vmem:[%s670 + $0x18] sm:$0xff]
    %676 = vset.pattern.permute.xlu0 0
    %677 = vperm.xlu0 %676, %v671
    %v678 = vpop.permute.xlu0 %677
    %681 = vset.pattern.permute.xlu0 0
    %682 = vperm.xlu0 %681, %v672
    %v683 = vpop.permute.xlu0 %682
    %686 = vset.pattern.permute.xlu0 0
    %687 = vperm.xlu0 %686, %v673
    %v688 = vpop.permute.xlu0 %687
    %691 = vset.pattern.permute.xlu0 0
    %692 = vperm.xlu0 %691, %v674
    %v693 = vpop.permute.xlu0 %692
    %v695 = vmul.f32 %v662, %v678
    %v696 = vmul.f32 %v663, %v678
    %v697 = vmul.f32 %v664, %v683
    %v698 = vmul.f32 %v665, %v683
    %v699 = vmul.f32 %v666, %v688
    %v700 = vmul.f32 %v667, %v688
    %v701 = vmul.f32 %v668, %v693
    %v702 = vmul.f32 %v669, %v693
    %v703 = vadd.f32 %v695, %v697
    %v704 = vadd.f32 %v703, %v699
    %v705 = vadd.f32 %v704, %v701
    %v706 = vrot.slane %v705, 4
    %v707 = vadd.f32 %v705, %v706
    %v708 = vrot.slane %v707, 2
    %v709 = vadd.f32 %v707, %v708
    %v710 = vrot.slane %v709, 1
    %v711 = vadd.f32 %v709, %v710
    %v712 = vadd.f32 %v696, %v698
    %v713 = vadd.f32 %v712, %v700
    %v714 = vadd.f32 %v713, %v702
    %v715 = vrot.slane %v714, 4
    %v716 = vadd.f32 %v714, %v715
    %v717 = vrot.slane %v716, 2
    %v718 = vadd.f32 %v716, %v717
    %v719 = vrot.slane %v718, 1
    %v720 = vadd.f32 %v718, %v719
    %v721 = vld [vmem:[#allocation2] sm:$0x1]
    %723 = vset.pattern.permute.xlu0 0
    %724 = vperm.xlu0 %723, %v721
    %v725 = vpop.permute.xlu0 %724
    %v727 = vlaneseq
    %v728 = vshrl.u32 %v727, 7
    %v729 = vsub.s32 0, %v728
    %v730 = vrot.slane %v725, %v729
    %v731 = vadd.f32 %v711, %v730
    %v732 = vadd.f32 %v720, %v730
    %v735 = vcombine.low %v731, %v732
    %v737 = vunpack.c.l.s4 1966171168
    %v738 = vunpack.c.0.s8 %v737
    %v739 = vlaneseq
    %v740 = vshrl.u32 %v739, 7
    %v741 = vsub.s32 %v738, %v740
    %v742 = vrot.slane %v735, %v741
    %v744 = vunpack.c.l.s4 1966171168
    %v745 = vunpack.c.0.s8 %v744
    %v746 = vlaneseq
    %v747 = vshrl.u32 %v746, 7
    %v748 = vsub.s32 %v745, %v747
    %v749 = vrot.slane %v742, %v748
    %v751 = vlaneseq
    %vm752 = vcmp.ge.s32.totalorder %v751, 0
    %vm753 = vcmp.lt.s32.totalorder %v751, 256
    %vm754 = vmand %vm752, %vm753
    %755 = vst.msk [vmem:[#allocation3] sm:$0x3] %vm754, %v749
    // Predicated region
    $region22: #{tpu_custom_call.1} parent=1 // pred_check
      _
    $region23: #{tpu_custom_call.1} parent=1 // pred_check_branch
      %757 = sbr.rel (0) target = $region25
    $region24: #{tpu_custom_call.1} parent=1 // pred_region
      %s759 = ssub.s32 32, 32
      %760 = vsyncadd [#allocation4], %s759
      %s762 = sshll.u32 [#allocation3], 4
      %s763 = int_to_ptr.vmem [resolvable:$true] %s762
      %765 = dma.vmem_to_hbm [thread:$0]  %s763, 32, %s5, [#allocation4]
    $region25: #{tpu_custom_call.1} parent=1 // pred_fallthru
      _
    // Predicated region
    $region26: #{tpu_custom_call.1} parent=1 // pred_check
      _
    $region27: #{tpu_custom_call.1} parent=1 // pred_check_branch
      %767 = sbr.rel (0) target = $region29
    $region28: #{tpu_custom_call.1} parent=1 // pred_region
      %768 = dma.done [#allocation4], 32
    $region29: #{tpu_custom_call.1} parent=1 // pred_fallthru
      _
    %769 = vsyncpa [#allocation4], 1

</llo_original>
